<compile_context>
chip_gen: v7x
topology: tpu7x:2x2x1
jax: 0.10.0
libtpu: 0.0.40
codegen_flags: <defaults>
</compile_context>

<pallas_src>
import jax
import jax.numpy as jnp
from jax import lax
from jax.experimental import pallas as pl
from jax.experimental.pallas import tpu as pltpu


def _pick_tile_s(S, H, itemsize=4):
    """Largest multiple-of-8 divisor of S, capped so one tile buffer stays <= ~2 MiB."""
    cap = max(8, (2 * 1024 * 1024) // max(1, H * itemsize))
    cap = min(cap, 512, S)
    best = 8
    for cand in range(8, cap + 1, 8):
        if S % cand == 0:
            best = cand
    return best


def _layer_norm(x, gamma, beta, eps=1e-12):
    """LayerNorm over the last dim (f32 math), eps matches nn.LayerNorm(eps=1e-12)."""
    mean = jnp.mean(x, axis=-1, keepdims=True)
    xc = x - mean
    var = jnp.mean(xc * xc, axis=-1, keepdims=True)
    inv = lax.rsqrt(var + jnp.float32(eps))
    return xc * inv * gamma + beta


def _make_vmem_gather_kernel(S, TILE_S, H):
    """Fast path: token table resident in VMEM, gather via dynamic-slice loads."""

    def kernel(ids_ref,      # SMEM (B*S,) int32  -- scalar-prefetched token ids
               tok_ref,      # VMEM (V, H)        -- whole table, DMA'd once
               pos_ref,      # VMEM (TILE_S, H)
               gamma_ref,    # VMEM (1, H)
               beta_ref,     # VMEM (1, H)
               out_ref,      # VMEM (TILE_S, H)   -- leading batch dim squeezed
               gather_buf):  # VMEM scratch (TILE_S, H), table dtype
        b = pl.program_id(0)
        j = pl.program_id(1)
        base = b * S + j * TILE_S

        def gather_row(r, carry):
            tok_id = ids_ref[base + r]
            gather_buf[pl.ds(r, 1), :] = tok_ref[pl.ds(tok_id, 1), :]
            return carry

        lax.fori_loop(0, TILE_S, gather_row, 0, unroll=min(TILE_S, 8))

        x = gather_buf[...].astype(jnp.float32) + pos_ref[...].astype(jnp.float32)
        y = _layer_norm(x, gamma_ref[...].astype(jnp.float32),
                        beta_ref[...].astype(jnp.float32))
        # TODO(synk): training-mode dropout (nn.Dropout p=0.5) omitted; eval-mode identity.
        out_ref[...] = y.astype(out_ref.dtype)

    return kernel


def _make_hbm_gather_kernel(S, TILE_S, H):
    """Large-table path: per-row DMA gather from HBM, double-buffered across grid steps."""

    def kernel(ids_ref,       # SMEM (B*S,) int32
               tok_hbm_ref,   # HBM  (V, H) raw ref
               pos_ref,       # VMEM (TILE_S, H)
               gamma_ref,     # VMEM (1, H)
               beta_ref,      # VMEM (1, H)
               out_ref,       # VMEM (TILE_S, H)
               gather_buf,    # VMEM scratch (2, TILE_S, H), table dtype
               sem):          # DMA semaphores (2,) -- one per slot
        b = pl.program_id(0)
        j = pl.program_id(1)
        nj = pl.num_programs(1)
        slot = lax.rem(j, 2)

        def issue_tile_gather(tile_j, slot_idx):
            base = b * S + tile_j * TILE_S

            def issue_row(r, carry):
                tok_id = ids_ref[base + r]
                pltpu.make_async_copy(
                    tok_hbm_ref.at[pl.ds(tok_id, 1)],            # (1, H) row in HBM
                    gather_buf.at[slot_idx].at[pl.ds(r, 1)],     # (1, H) slot row in VMEM
                    sem.at[slot_idx],                            # all rows -> one sem
                ).start()
                return carry

            lax.fori_loop(0, TILE_S, issue_row, 0, unroll=min(TILE_S, 8))

        # Prime the pipeline at the start of each batch row (j == 0).
        @pl.when(j == 0)
        def _():
            issue_tile_gather(j, slot)

        # Prefetch next seq-tile's rows into the other slot (overlaps with compute below).
        @pl.when(j + 1 < nj)
        def _():
            issue_tile_gather(j + 1, 1 - slot)

        # Single wait covering all TILE_S row copies of the current slot
        # (DMA sems count bytes; total issued == TILE_S rows == this descriptor's size).
        pltpu.make_async_copy(
            tok_hbm_ref.at[pl.ds(0, TILE_S)],
            gather_buf.at[slot],
            sem.at[slot],
        ).wait()

        x = gather_buf[slot].astype(jnp.float32) + pos_ref[...].astype(jnp.float32)
        y = _layer_norm(x, gamma_ref[...].astype(jnp.float32),
                        beta_ref[...].astype(jnp.float32))
        # TODO(synk): training-mode dropout (nn.Dropout p=0.5) omitted; eval-mode identity.
        out_ref[...] = y.astype(out_ref.dtype)

    return kernel


def embeddings_forward(input_ids, token_table, pos_table, gamma, beta, *,
                       tile_s=None, gather_mode="auto",
                       vmem_table_limit=8 * 1024 * 1024):
    """Forward pass of `Embeddings` (token emb + pos emb + LayerNorm, dropout=eval)."""
    B, S = input_ids.shape
    V, H = token_table.shape
    P, Hp = pos_table.shape
    assert Hp == H and gamma.shape == (H,) and beta.shape == (H,)
    assert S <= P, "sequence longer than max_position_embeddings"
    assert gather_mode in ("auto", "vmem", "hbm")

    itemsize = token_table.dtype.itemsize
    if tile_s is None:
        tile_s = _pick_tile_s(S, H, itemsize)
    assert S % tile_s == 0 and tile_s % 8 == 0, \
        "seq tile must be a multiple of 8 that divides S (S must be a multiple of 8)"
    nj = S // tile_s

    table_bytes = V * H * itemsize
    if gather_mode == "auto":
        gather_mode = "vmem" if table_bytes <= vmem_table_limit else "hbm"

    ids_flat = input_ids.reshape(B * S).astype(jnp.int32)
    gamma2 = gamma.reshape(1, H)
    beta2 = beta.reshape(1, H)

    # index_maps receive the scalar-prefetch ref (ids) as a trailing positional arg.
    tail_in_specs = [
        pl.BlockSpec((tile_s, H), lambda b, j, ids: (j, 0)),   # pos rows for this tile
        pl.BlockSpec((1, H), lambda b, j, ids: (0, 0)),        # gamma
        pl.BlockSpec((1, H), lambda b, j, ids: (0, 0)),        # beta
    ]
    out_spec = pl.BlockSpec((None, tile_s, H), lambda b, j, ids: (b, j, 0))

    if gather_mode == "vmem":
        kernel = _make_vmem_gather_kernel(S, tile_s, H)
        in_specs = [pl.BlockSpec((V, H), lambda b, j, ids: (0, 0))] + tail_in_specs
        scratch = [pltpu.VMEM((tile_s, H), token_table.dtype)]
        dims = ("parallel", "parallel")
    else:
        kernel = _make_hbm_gather_kernel(S, tile_s, H)
        in_specs = [pl.BlockSpec(memory_space=pl.ANY)] + tail_in_specs
        scratch = [pltpu.VMEM((2, tile_s, H), token_table.dtype),
                   pltpu.SemaphoreType.DMA((2,))]
        # seq axis must be sequential for the cross-step gather prefetch.
        dims = ("parallel", "arbitrary")

    # Rough VMEM footprint; only raise the scoped limit when it would bind (v5e default
    # is 16 MiB).  Tile sizing already keeps us far under v7x's 64 MiB physical VMEM.
    est = 6 * tile_s * H * 4 + (table_bytes if gather_mode == "vmem" else 2 * tile_s * H * itemsize)
    vmem_limit = min(2 * est, 48 * 1024 * 1024) if est > 12 * 1024 * 1024 else None

    out = pl.pallas_call(
        kernel,
        out_shape=jax.ShapeDtypeStruct((B, S, H), token_table.dtype),
        grid_spec=pltpu.PrefetchScalarGridSpec(
            num_scalar_prefetch=1,          # ids_flat -> SMEM
            grid=(B, nj),
            in_specs=in_specs,
            out_specs=out_spec,
            scratch_shapes=scratch,
        ),
        compiler_params=pltpu.CompilerParams(
            dimension_semantics=dims,
            vmem_limit_bytes=vmem_limit),
    )(ids_flat, token_table, pos_table, gamma2, beta2)
    return out


def embeddings_reference(input_ids, token_table, pos_table, gamma, beta):
    """Pure-JAX reference matching the PyTorch forward (dropout in eval mode)."""
    B, S = input_ids.shape
    tok = jnp.take(token_table, input_ids, axis=0)          # (B, S, H)
    pos = pos_table[:S][None, :, :]                         # (1, S, H)
    x = tok + pos
    mean = jnp.mean(x, axis=-1, keepdims=True)
    var = jnp.mean((x - mean) ** 2, axis=-1, keepdims=True)
    y = (x - mean) / jnp.sqrt(var + 1e-12)
    return y * gamma[None, None, :] + beta[None, None, :]


if __name__ == "__main__":
    keys = jax.random.split(jax.random.PRNGKey(0), 8)

    # ---- Test 1: module config (vocab=64, max_pos=16, hidden=32) -> VMEM fast path ----
    VOCAB, MAX_POS, HIDDEN = 64, 16, 32
    B, S = 2, 8
    input_ids = jax.random.randint(keys[0], (B, S), 0, VOCAB, dtype=jnp.int32)
    token_table = jax.random.normal(keys[1], (VOCAB, HIDDEN), dtype=jnp.float32)
    pos_table = jax.random.normal(keys[2], (MAX_POS, HIDDEN), dtype=jnp.float32)
    gamma = jnp.ones((HIDDEN,), dtype=jnp.float32)   # LayerNorm weight init
    beta = jnp.zeros((HIDDEN,), dtype=jnp.float32)   # LayerNorm bias init

    out = embeddings_forward(input_ids, token_table, pos_table, gamma, beta)
    out = jax.block_until_ready(out)
    ref = embeddings_reference(input_ids, token_table, pos_table, gamma, beta)
    assert out.shape == (B, S, HIDDEN)
    assert jnp.allclose(out, ref, atol=1e-5, rtol=1e-5), "fast-path mismatch vs reference"

    # ---- Test 2: force the HBM double-buffered DMA-gather path (still small shapes) ----
    V2, P2, H2 = 512, 64, 128
    B2, S2 = 2, 64
    ids2 = jax.random.randint(keys[3], (B2, S2), 0, V2, dtype=jnp.int32)
    tok2 = jax.random.normal(keys[4], (V2, H2), dtype=jnp.float32)
    pos2 = jax.random.normal(keys[5], (P2, H2), dtype=jnp.float32)
    g2 = 1.0 + 0.1 * jax.random.normal(keys[6], (H2,), dtype=jnp.float32)
    b2 = 0.1 * jax.random.normal(keys[7], (H2,), dtype=jnp.float32)

    out2 = embeddings_forward(ids2, tok2, pos2, g2, b2, tile_s=16, gather_mode="hbm")
    out2 = jax.block_until_ready(out2)
    ref2 = embeddings_reference(ids2, tok2, pos2, g2, b2)
    assert out2.shape == (B2, S2, H2)
    assert jnp.allclose(out2, ref2, atol=1e-4, rtol=1e-4), "HBM-path mismatch vs reference"

    print("KERNEL_OK")
</pallas_src>

<mosaic_0001>
module attributes {stable_mosaic.version = 11 : i64} {
  func.func @kernel(%arg0: i32, %arg1: i32, %arg2: memref<16xi32, #tpu.memory_space<smem>>, %arg3: memref<64x32xf32, #tpu.memory_space<vmem>>, %arg4: memref<8x32xf32, #tpu.memory_space<vmem>>, %arg5: memref<1x32xf32, #tpu.memory_space<vmem>>, %arg6: memref<1x32xf32, #tpu.memory_space<vmem>>, %arg7: memref<1x8x32xf32, #tpu.memory_space<vmem>>, %arg8: memref<8x32xf32, #tpu.memory_space<vmem>>) attributes {dimension_semantics = [#tpu.dimension_semantics<parallel>, #tpu.dimension_semantics<parallel>], iteration_bounds = array<i64: 2, 1>, scalar_prefetch = 1 : i64, scratch_operands = 1 : i64, tpu.core_type = #tpu.core_type<tc>, window_params = [{pipeline_mode = #tpu.pipeline_mode<synchronous>, transform_indices = @transform_0, window_bounds = array<i64: 64, 32>}, {transform_indices = @transform_1, window_bounds = array<i64: 8, 32>}, {pipeline_mode = #tpu.pipeline_mode<synchronous>, transform_indices = @transform_2, window_bounds = array<i64: 1, 32>}, {pipeline_mode = #tpu.pipeline_mode<synchronous>, transform_indices = @transform_3, window_bounds = array<i64: 1, 32>}, {transform_indices = @transform_4, window_bounds = array<i64: 1, 8, 32>}]} {
    %c8_i32 = arith.constant 8 : i32
    %0 = arith.muli %arg0, %c8_i32 : i32
    %c8_i32_0 = arith.constant 8 : i32
    %1 = arith.muli %arg1, %c8_i32_0 : i32
    %2 = arith.addi %0, %1 : i32
    %c0_i32 = arith.constant 0 : i32
    %3 = arith.addi %2, %c0_i32 : i32
    %4 = arith.index_cast %3 : i32 to index
    %5 = memref.load %arg2[%4] : memref<16xi32, #tpu.memory_space<smem>>
    %6 = arith.index_cast %5 : i32 to index
    %c0 = arith.constant 0 : index
    %7 = vector.load %arg3[%6, %c0] : memref<64x32xf32, #tpu.memory_space<vmem>>, vector<1x32xf32>
    %8 = arith.index_cast %c0_i32 : i32 to index
    %c0_1 = arith.constant 0 : index
    %9 = vector.load %arg8[%8, %c0_1] : memref<8x32xf32, #tpu.memory_space<vmem>>, vector<1x32xf32>
    tpu.vector_store %arg8[%8, %c0_1], %7 {strides = array<i32>} : memref<8x32xf32, #tpu.memory_space<vmem>>, vector<1x32xf32>,
    %c1_i32 = arith.constant 1 : i32
    %10 = arith.addi %2, %c1_i32 : i32
    %11 = arith.index_cast %10 : i32 to index
    %12 = memref.load %arg2[%11] : memref<16xi32, #tpu.memory_space<smem>>
    %13 = arith.index_cast %12 : i32 to index
    %c0_2 = arith.constant 0 : index
    %14 = vector.load %arg3[%13, %c0_2] : memref<64x32xf32, #tpu.memory_space<vmem>>, vector<1x32xf32>
    %15 = arith.index_cast %c1_i32 : i32 to index
    %c0_3 = arith.constant 0 : index
    %16 = vector.load %arg8[%15, %c0_3] : memref<8x32xf32, #tpu.memory_space<vmem>>, vector<1x32xf32>
    tpu.vector_store %arg8[%15, %c0_3], %14 {strides = array<i32>} : memref<8x32xf32, #tpu.memory_space<vmem>>, vector<1x32xf32>,
    %c2_i32 = arith.constant 2 : i32
    %17 = arith.addi %2, %c2_i32 : i32
    %18 = arith.index_cast %17 : i32 to index
    %19 = memref.load %arg2[%18] : memref<16xi32, #tpu.memory_space<smem>>
    %20 = arith.index_cast %19 : i32 to index
    %c0_4 = arith.constant 0 : index
    %21 = vector.load %arg3[%20, %c0_4] : memref<64x32xf32, #tpu.memory_space<vmem>>, vector<1x32xf32>
    %22 = arith.index_cast %c2_i32 : i32 to index
    %c0_5 = arith.constant 0 : index
    %23 = vector.load %arg8[%22, %c0_5] : memref<8x32xf32, #tpu.memory_space<vmem>>, vector<1x32xf32>
    tpu.vector_store %arg8[%22, %c0_5], %21 {strides = array<i32>} : memref<8x32xf32, #tpu.memory_space<vmem>>, vector<1x32xf32>,
    %c3_i32 = arith.constant 3 : i32
    %24 = arith.addi %2, %c3_i32 : i32
    %25 = arith.index_cast %24 : i32 to index
    %26 = memref.load %arg2[%25] : memref<16xi32, #tpu.memory_space<smem>>
    %27 = arith.index_cast %26 : i32 to index
    %c0_6 = arith.constant 0 : index
    %28 = vector.load %arg3[%27, %c0_6] : memref<64x32xf32, #tpu.memory_space<vmem>>, vector<1x32xf32>
    %29 = arith.index_cast %c3_i32 : i32 to index
    %c0_7 = arith.constant 0 : index
    %30 = vector.load %arg8[%29, %c0_7] : memref<8x32xf32, #tpu.memory_space<vmem>>, vector<1x32xf32>
    tpu.vector_store %arg8[%29, %c0_7], %28 {strides = array<i32>} : memref<8x32xf32, #tpu.memory_space<vmem>>, vector<1x32xf32>,
    %c4_i32 = arith.constant 4 : i32
    %31 = arith.addi %2, %c4_i32 : i32
    %32 = arith.index_cast %31 : i32 to index
    %33 = memref.load %arg2[%32] : memref<16xi32, #tpu.memory_space<smem>>
    %34 = arith.index_cast %33 : i32 to index
    %c0_8 = arith.constant 0 : index
    %35 = vector.load %arg3[%34, %c0_8] : memref<64x32xf32, #tpu.memory_space<vmem>>, vector<1x32xf32>
    %36 = arith.index_cast %c4_i32 : i32 to index
    %c0_9 = arith.constant 0 : index
    %37 = vector.load %arg8[%36, %c0_9] : memref<8x32xf32, #tpu.memory_space<vmem>>, vector<1x32xf32>
    tpu.vector_store %arg8[%36, %c0_9], %35 {strides = array<i32>} : memref<8x32xf32, #tpu.memory_space<vmem>>, vector<1x32xf32>,
    %c5_i32 = arith.constant 5 : i32
    %38 = arith.addi %2, %c5_i32 : i32
    %39 = arith.index_cast %38 : i32 to index
    %40 = memref.load %arg2[%39] : memref<16xi32, #tpu.memory_space<smem>>
    %41 = arith.index_cast %40 : i32 to index
    %c0_10 = arith.constant 0 : index
    %42 = vector.load %arg3[%41, %c0_10] : memref<64x32xf32, #tpu.memory_space<vmem>>, vector<1x32xf32>
    %43 = arith.index_cast %c5_i32 : i32 to index
    %c0_11 = arith.constant 0 : index
    %44 = vector.load %arg8[%43, %c0_11] : memref<8x32xf32, #tpu.memory_space<vmem>>, vector<1x32xf32>
    tpu.vector_store %arg8[%43, %c0_11], %42 {strides = array<i32>} : memref<8x32xf32, #tpu.memory_space<vmem>>, vector<1x32xf32>,
    %c6_i32 = arith.constant 6 : i32
    %45 = arith.addi %2, %c6_i32 : i32
    %46 = arith.index_cast %45 : i32 to index
    %47 = memref.load %arg2[%46] : memref<16xi32, #tpu.memory_space<smem>>
    %48 = arith.index_cast %47 : i32 to index
    %c0_12 = arith.constant 0 : index
    %49 = vector.load %arg3[%48, %c0_12] : memref<64x32xf32, #tpu.memory_space<vmem>>, vector<1x32xf32>
    %50 = arith.index_cast %c6_i32 : i32 to index
    %c0_13 = arith.constant 0 : index
    %51 = vector.load %arg8[%50, %c0_13] : memref<8x32xf32, #tpu.memory_space<vmem>>, vector<1x32xf32>
    tpu.vector_store %arg8[%50, %c0_13], %49 {strides = array<i32>} : memref<8x32xf32, #tpu.memory_space<vmem>>, vector<1x32xf32>,
    %c7_i32 = arith.constant 7 : i32
    %52 = arith.addi %2, %c7_i32 : i32
    %53 = arith.index_cast %52 : i32 to index
    %54 = memref.load %arg2[%53] : memref<16xi32, #tpu.memory_space<smem>>
    %55 = arith.index_cast %54 : i32 to index
    %c0_14 = arith.constant 0 : index
    %56 = vector.load %arg3[%55, %c0_14] : memref<64x32xf32, #tpu.memory_space<vmem>>, vector<1x32xf32>
    %57 = arith.index_cast %c7_i32 : i32 to index
    %c0_15 = arith.constant 0 : index
    %58 = vector.load %arg8[%57, %c0_15] : memref<8x32xf32, #tpu.memory_space<vmem>>, vector<1x32xf32>
    tpu.vector_store %arg8[%57, %c0_15], %56 {strides = array<i32>} : memref<8x32xf32, #tpu.memory_space<vmem>>, vector<1x32xf32>,
    %c8_i32_16 = arith.constant 8 : i32
    %c0_17 = arith.constant 0 : index
    %c0_18 = arith.constant 0 : index
    %59 = vector.load %arg8[%c0_17, %c0_18] : memref<8x32xf32, #tpu.memory_space<vmem>>, vector<8x32xf32>
    %c0_19 = arith.constant 0 : index
    %c0_20 = arith.constant 0 : index
    %60 = vector.load %arg4[%c0_19, %c0_20] : memref<8x32xf32, #tpu.memory_space<vmem>>, vector<8x32xf32>
    %61 = arith.addf %59, %60 : vector<8x32xf32>
    %c0_21 = arith.constant 0 : index
    %c0_22 = arith.constant 0 : index
    %62 = vector.load %arg5[%c0_21, %c0_22] : memref<1x32xf32, #tpu.memory_space<vmem>>, vector<1x32xf32>
    %c0_23 = arith.constant 0 : index
    %c0_24 = arith.constant 0 : index
    %63 = vector.load %arg6[%c0_23, %c0_24] : memref<1x32xf32, #tpu.memory_space<vmem>>, vector<1x32xf32>
    %cst = arith.constant dense<0.000000e+00> : vector<8xf32>
    %64 = vector.multi_reduction <add>, %61, %cst [1] : vector<8x32xf32> to vector<8xf32>
    %65 = vector.shape_cast %64 : vector<8xf32> to vector<8x1xf32>
    %cst_25 = arith.constant 3.200000e+01 : f32
    %66 = vector.broadcast %cst_25 : f32 to vector<8x1xf32>
    %67 = arith.divf %65, %66 : vector<8x1xf32>
    %68 = vector.broadcast %67 : vector<8x1xf32> to vector<8x32xf32>
    %69 = arith.subf %61, %68 : vector<8x32xf32>
    %70 = arith.mulf %69, %69 : vector<8x32xf32>
    %cst_26 = arith.constant dense<0.000000e+00> : vector<8xf32>
    %71 = vector.multi_reduction <add>, %70, %cst_26 [1] : vector<8x32xf32> to vector<8xf32>
    %72 = vector.shape_cast %71 : vector<8xf32> to vector<8x1xf32>
    %cst_27 = arith.constant 3.200000e+01 : f32
    %73 = vector.broadcast %cst_27 : f32 to vector<8x1xf32>
    %74 = arith.divf %72, %73 : vector<8x1xf32>
    %cst_28 = arith.constant 9.99999996E-13 : f32
    %75 = vector.broadcast %cst_28 : f32 to vector<8x1xf32>
    %76 = arith.addf %74, %75 : vector<8x1xf32>
    %77 = math.rsqrt %76 : vector<8x1xf32>
    %78 = vector.broadcast %77 : vector<8x1xf32> to vector<8x32xf32>
    %79 = arith.mulf %69, %78 : vector<8x32xf32>
    %80 = vector.broadcast %62 : vector<1x32xf32> to vector<8x32xf32>
    %81 = arith.mulf %79, %80 : vector<8x32xf32>
    %82 = vector.broadcast %63 : vector<1x32xf32> to vector<8x32xf32>
    %83 = arith.addf %81, %82 : vector<8x32xf32>
    %c0_29 = arith.constant 0 : index
    %c0_30 = arith.constant 0 : index
    %c0_31 = arith.constant 0 : index
    %84 = vector.load %arg7[%c0_29, %c0_30, %c0_31] : memref<1x8x32xf32, #tpu.memory_space<vmem>>, vector<1x8x32xf32>
    %85 = vector.shape_cast %84 : vector<1x8x32xf32> to vector<8x32xf32>
    %86 = vector.shape_cast %83 : vector<8x32xf32> to vector<1x8x32xf32>
    tpu.vector_store %arg7[%c0_29, %c0_30, %c0_31], %86 {strides = array<i32>} : memref<1x8x32xf32, #tpu.memory_space<vmem>>, vector<1x8x32xf32>,
    return
  }
  func.func @transform_0(%arg0: i32, %arg1: i32, %arg2: memref<16xi32, #tpu.memory_space<smem>>) -> (i32, i32) {
    %c0_i32 = arith.constant 0 : i32
    %c0_i32_0 = arith.constant 0 : i32
    %c0_i32_1 = arith.constant 0 : i32
    return %c0_i32, %c0_i32_0 : i32, i32
  }
  func.func @transform_1(%arg0: i32, %arg1: i32, %arg2: memref<16xi32, #tpu.memory_space<smem>>) -> (i32, i32) {
    %c0_i32 = arith.constant 0 : i32
    %c0_i32_0 = arith.constant 0 : i32
    return %arg1, %c0_i32 : i32, i32
  }
  func.func @transform_2(%arg0: i32, %arg1: i32, %arg2: memref<16xi32, #tpu.memory_space<smem>>) -> (i32, i32) {
    %c0_i32 = arith.constant 0 : i32
    %c0_i32_0 = arith.constant 0 : i32
    %c0_i32_1 = arith.constant 0 : i32
    return %c0_i32, %c0_i32_0 : i32, i32
  }
  func.func @transform_3(%arg0: i32, %arg1: i32, %arg2: memref<16xi32, #tpu.memory_space<smem>>) -> (i32, i32) {
    %c0_i32 = arith.constant 0 : i32
    %c0_i32_0 = arith.constant 0 : i32
    %c0_i32_1 = arith.constant 0 : i32
    return %c0_i32, %c0_i32_0 : i32, i32
  }
  func.func @transform_4(%arg0: i32, %arg1: i32, %arg2: memref<16xi32, #tpu.memory_space<smem>>) -> (i32, i32, i32) {
    %c0_i32 = arith.constant 0 : i32
    %c0_i32_0 = arith.constant 0 : i32
    return %arg0, %arg1, %c0_i32 : i32, i32, i32
  }
}

</mosaic_0001>

<llo_original>
// kernel: tpu_custom_call.1
$region0: #{tpu_custom_call.1}
  #allocation0 [shape = 'u32[]', space=smem, size = 0x4, offset = 0x4, fixed_abs, tag = 'smem constant byte address 0x4 - core index']
  #allocation1 [shape = 'u32[144,128]{1,0:T(1,128)}', space=vmem, size = 0x12000, scoped, tag = 'internal scratch']
  #allocation2 [shape = 'f32[8,32]{1,0:T(8,128)}', space=vmem, size = 0x1000, scoped, tag = 'scratch operand']
  #allocation3 [shape = 's32[1]{0}', space=sflag, size = 0x4, scoped, tag = 'scoped memory for tpu_custom_call.1']
  #allocation4 [shape = 'u8[512]{0}', space=smem, size = 0x200, scoped, tag = 'prefetched SMEM operand 0']
  %s0 = inlined_call_operand.vmem [shape: s32[16], index: 0, kind: input, shape index: {}]
  %s1 = inlined_call_operand.vmem [shape: f32[64,32], index: 1, kind: input, shape index: {}]
  %s2 = inlined_call_operand.vmem [shape: f32[16,32], index: 2, kind: input, shape index: {}]
  %s3 = inlined_call_operand.vmem [shape: f32[1,32], index: 3, kind: input, shape index: {}]
  %s4 = inlined_call_operand.vmem [shape: f32[1,32], index: 4, kind: input, shape index: {}]
  %s5 = inlined_call_operand.hbm [shape: f32[2,8,32], index: 5, kind: output, shape index: {}]
  %s6 = sld [smem:[#allocation0]]
  $region49: #{tpu_custom_call.1} parent=0
    _
  %s8 = ssub.s32 1, %s6
  %s9 = scalar_select 0, %s8, %s6
  %s10 = sshll.u32 %s0, 4
  %s11 = int_to_ptr.vmem [resolvable:$true] %s10
  %13 = dma.vmem_to_smem %s11, 16, [#allocation4], [#allocation3]
  %14 = dma.done [#allocation3], 16
  %15 = sfence
  $region1: #{tpu_custom_call.1} parent=0
    #allocation5 [shape = 'u8[8192]{0}', space=vmem, size = 0x2000, scoped, tag = 'output window, operand 0']
    #allocation6 [shape = 's32[2]{0}', space=sflag, size = 0x8, scoped, tag = 'scoped memory for tpu_custom_call.1']
    %16 = vsyncpa [#allocation6], 0
    %s17 = scalar_lea.sflag [#allocation6], 1
    %18 = vsyncpa %s17, 0
    loop: start=0, step=1, limit=4
    $region2: #{tpu_custom_call.1} parent=1 // loop_pre_header
      _
    $region3: #{tpu_custom_call.1} parent=1 // loop_header
      %s20 = sphi 0, %s24
      %p21 = scmp.ge.s32.totalorder %s20, 4
      %s27 = sphi 0, %s39
      %s28 = sphi 0, %s35
      %s29 = sphi 0, %s27
      %s30 = sphi 0, %s28
      %s31 = sphi 0, %s29
      %s32 = sphi 0, %s30
      %s40 = sphi 0, %s40
      %s42 = sphi 0, %s40
      %s43 = sphi 0, %s42
      %s57 = sphi 0, %s43
      %s63 = sphi 0, %s65
      %s66 = sphi 0, %s63
      %s67 = sphi 0, %s66
      %s83 = sphi 0, %s67
      %s87 = sphi 0, %s87
      %s89 = sphi 0, %s87
      %s90 = sphi 0, %s89
      %s104 = sphi 0, %s90
      %s108 = sphi 0, %s108
      %s110 = sphi 0, %s108
      %s111 = sphi 0, %s110
      %s125 = sphi 0, %s111
      %s133 = sphi 0, %s135
      %s136 = sphi 0, %s133
      %s137 = sphi 0, %s136
      %s153 = sphi 0, %s137
    $region4: #{tpu_custom_call.1} parent=1 // loop_header_branch
      %23 = sbr.rel (%p21) target = $region8
    $region5: #{tpu_custom_call.1} parent=1 // loop_body
      %s25 = ssub.s32 %s20, 1
      %s26 = ssub.s32 %s20, 2
      %s33 = sadd.s32 1, %s28
      %p34 = scmp.ge.s32.totalorder %s33, 1
      %s35 = scalar_select %p34, 0, %s33
      %s36 = sadd.s32 1, %s27
      %s37 = scalar_select %p34, %s36, %s27
      %p38 = scmp.ge.s32.totalorder %s37, 2
      %s39 = scalar_select %p38, 0, %s37
      %s41 = sadd.s32 %s40, 1
      %p44 = scmp.eq.s32.totalorder %s20, 1
      %p45 = scmp.ne.s32.totalorder %s40, %s42
      %p46 = scmp.eq.s32.totalorder %s20, 0
      %p47 = por %p45, %p46
      %p48 = scmp.ne.s32.totalorder %s40, %s42
      %p49 = scmp.eq.s32.totalorder %s25, 1
      %p50 = por %p48, %p49
      %p51 = scmp.ne.s32.totalorder %s42, %s43
      %p52 = scmp.eq.s32.totalorder %s25, 0
      %p53 = por %p51, %p52
      %p54 = scmp.ne.s32.totalorder %s42, %s43
      %p55 = scmp.eq.s32.totalorder %s26, 1
      %p56 = por %p54, %p55
      %p58 = scmp.ne.s32.totalorder %s43, %s57
      %p59 = scmp.eq.s32.totalorder %s26, 0
      %p60 = por %p58, %p59
      %s61 = ssub.s32 %s28, %s35
      %p62 = scmp.eq.s32.totalorder %s61, 0
      %s64 = sadd.s32 %s63, 1
      %s65 = scalar_select %p62, %s63, %s64
      %p68 = pneg %p62
      %p69 = scmp.eq.s32.totalorder %s20, 1
      %p70 = por %p68, %p69
      %p71 = scmp.ne.s32.totalorder %s63, %s66
      %p72 = scmp.eq.s32.totalorder %s20, 0
      %p73 = por %p71, %p72
      %p74 = scmp.ne.s32.totalorder %s63, %s66
      %p75 = scmp.eq.s32.totalorder %s25, 1
      %p76 = por %p74, %p75
      %p77 = scmp.ne.s32.totalorder %s66, %s67
      %p78 = scmp.eq.s32.totalorder %s25, 0
      %p79 = por %p77, %p78
      %p80 = scmp.ne.s32.totalorder %s66, %s67
      %p81 = scmp.eq.s32.totalorder %s26, 1
      %p82 = por %p80, %p81
      %p84 = scmp.ne.s32.totalorder %s67, %s83
      %p85 = scmp.eq.s32.totalorder %s26, 0
      %p86 = por %p84, %p85
      %s88 = sadd.s32 %s87, 1
      %p91 = scmp.eq.s32.totalorder %s20, 1
      %p92 = scmp.ne.s32.totalorder %s87, %s89
      %p93 = scmp.eq.s32.totalorder %s20, 0
      %p94 = por %p92, %p93
      %p95 = scmp.ne.s32.totalorder %s87, %s89
      %p96 = scmp.eq.s32.totalorder %s25, 1
      %p97 = por %p95, %p96
      %p98 = scmp.ne.s32.totalorder %s89, %s90
      %p99 = scmp.eq.s32.totalorder %s25, 0
      %p100 = por %p98, %p99
      %p101 = scmp.ne.s32.totalorder %s89, %s90
      %p102 = scmp.eq.s32.totalorder %s26, 1
      %p103 = por %p101, %p102
      %p105 = scmp.ne.s32.totalorder %s90, %s104
      %p106 = scmp.eq.s32.totalorder %s26, 0
      %p107 = por %p105, %p106
      %s109 = sadd.s32 %s108, 1
      %p112 = scmp.eq.s32.totalorder %s20, 1
      %p113 = scmp.ne.s32.totalorder %s108, %s110
      %p114 = scmp.eq.s32.totalorder %s20, 0
      %p115 = por %p113, %p114
      %p116 = scmp.ne.s32.totalorder %s108, %s110
      %p117 = scmp.eq.s32.totalorder %s25, 1
      %p118 = por %p116, %p117
      %p119 = scmp.ne.s32.totalorder %s110, %s111
      %p120 = scmp.eq.s32.totalorder %s25, 0
      %p121 = por %p119, %p120
      %p122 = scmp.ne.s32.totalorder %s110, %s111
      %p123 = scmp.eq.s32.totalorder %s26, 1
      %p124 = por %p122, %p123
      %p126 = scmp.ne.s32.totalorder %s111, %s125
      %p127 = scmp.eq.s32.totalorder %s26, 0
      %p128 = por %p126, %p127
      %s129 = ssub.s32 %s27, %s39
      %s130 = ssub.s32 %s28, %s35
      %s131 = sor.u32 %s129, %s130
      %p132 = scmp.eq.s32.totalorder %s131, 0
      %s134 = sadd.s32 %s133, 1
      %s135 = scalar_select %p132, %s133, %s134
      %p138 = pneg %p132
      %p139 = scmp.eq.s32.totalorder %s20, 1
      %p140 = por %p138, %p139
      %p141 = scmp.ne.s32.totalorder %s133, %s136
      %p142 = scmp.eq.s32.totalorder %s20, 0
      %p143 = por %p141, %p142
      %p144 = scmp.ne.s32.totalorder %s133, %s136
      %p145 = scmp.eq.s32.totalorder %s25, 1
      %p146 = por %p144, %p145
      %p147 = scmp.ne.s32.totalorder %s136, %s137
      %p148 = scmp.eq.s32.totalorder %s25, 0
      %p149 = por %p147, %p148
      %p150 = scmp.ne.s32.totalorder %s136, %s137
      %p151 = scmp.eq.s32.totalorder %s26, 1
      %p152 = por %p150, %p151
      %p154 = scmp.ne.s32.totalorder %s137, %s153
      %p155 = scmp.eq.s32.totalorder %s26, 0
      %p156 = por %p154, %p155
      %p157 = scmp.le.s32.totalorder 1, %s20
      %p158 = scmp.lt.s32.totalorder %s20, 3
      %p159 = pnand %p157, %p158
      %p160 = pneg %p159
      // Predicated region
      $region9: #{tpu_custom_call.1} parent=5 // pred_check
        _
      $region10: #{tpu_custom_call.1} parent=5 // pred_check_branch
        %162 = sbr.rel (%p159) target = $region12
      $region11: #{tpu_custom_call.1} parent=5 // pred_region
        %s163 = ssub.s32 %s20, 1
        // Predicated region
        $region13: #{tpu_custom_call.1} parent=11 // pred_check
          %p164 = pneg %p53
        $region14: #{tpu_custom_call.1} parent=11 // pred_check_branch
          %166 = sbr.rel (%p164) target = $region16
        $region15: #{tpu_custom_call.1} parent=11 // pred_region
          _
        $region16: #{tpu_custom_call.1} parent=11 // pred_fallthru
          _
        // Predicated region
        $region17: #{tpu_custom_call.1} parent=11 // pred_check
          %p167 = pneg %p79
        $region18: #{tpu_custom_call.1} parent=11 // pred_check_branch
          %169 = sbr.rel (%p167) target = $region20
        $region19: #{tpu_custom_call.1} parent=11 // pred_region
          %p170 = scmp.lt.s32.totalorder %s30, 1
          %s171 = scalar_select %p170, %s30, 1
          %s172 = smul.addr %s171, 8
          %s173 = scalar_lea.vmem %s2, %s172
        $region20: #{tpu_custom_call.1} parent=11 // pred_fallthru
          _
        // Predicated region
        $region21: #{tpu_custom_call.1} parent=11 // pred_check
          %p174 = pneg %p100
        $region22: #{tpu_custom_call.1} parent=11 // pred_check_branch
          %176 = sbr.rel (%p174) target = $region24
        $region23: #{tpu_custom_call.1} parent=11 // pred_region
          _
        $region24: #{tpu_custom_call.1} parent=11 // pred_fallthru
          _
        // Predicated region
        $region25: #{tpu_custom_call.1} parent=11 // pred_check
          %p177 = pneg %p121
        $region26: #{tpu_custom_call.1} parent=11 // pred_check_branch
          %179 = sbr.rel (%p177) target = $region28
        $region27: #{tpu_custom_call.1} parent=11 // pred_region
          _
        $region28: #{tpu_custom_call.1} parent=11 // pred_fallthru
          _
      $region12: #{tpu_custom_call.1} parent=5 // pred_fallthru
        _
      %p180 = scmp.lt.s32.totalorder %s20, 2
      // Predicated region
      $region29: #{tpu_custom_call.1} parent=5 // pred_check
        %p181 = pneg %p180
      $region30: #{tpu_custom_call.1} parent=5 // pred_check_branch
        %183 = sbr.rel (%p181) target = $region32
      $region31: #{tpu_custom_call.1} parent=5 // pred_region
        _
      $region32: #{tpu_custom_call.1} parent=5 // pred_fallthru
        _
      %p184 = scmp.le.s32.totalorder 1, %s20
      %p185 = scmp.lt.s32.totalorder %s20, 3
      %p186 = pnand %p184, %p185
      %p187 = pneg %p186
      // Predicated region
      $region33: #{tpu_custom_call.1} parent=5 // pred_check
        _
      $region34: #{tpu_custom_call.1} parent=5 // pred_check_branch
        %189 = sbr.rel (%p186) target = $region36
      $region35: #{tpu_custom_call.1} parent=5 // pred_region
        %s190 = ssub.s32 %s20, 1
        %p191 = pneg %p53
        %p192 = pneg %p50
        %p193 = scmp.lt.s32.totalorder %s30, 1
        %s194 = scalar_select %p193, %s30, 1
        %s195 = smul.addr %s194, 8
        %s196 = scalar_lea.vmem %s2, %s195
        %p197 = pneg %p79
        %p198 = pneg %p76
        %p199 = pneg %p100
        %p200 = pneg %p97
        %p201 = pneg %p121
        %p202 = pneg %p118
        %p203 = pneg %p149
        %p204 = pneg %p146
        %s205 = sand.u32 %s136, 1
        %s206 = scalar_lea.sflag [#allocation6], %s205
        %s207 = sand.u32 %s136, 1
        %s208 = smul.addr %s207, 8
        %s209 = scalar_lea.vmem [#allocation5], %s208
        %p210 = scmp.lt.s32.totalorder %s30, 1
        %s211 = scalar_select %p210, %s30, 1
        %s212 = smul.addr %s211, 8
        %s213 = scalar_lea.vmem %s2, %s212
        %s214 = smul.u32 %s29, 8
        %s215 = smul.u32 %s30, 8
        %s216 = sadd.s32 %s214, %s215
        %s217 = sld [smem:[#allocation4 + %s216]]
        %s218 = scalar_lea.vmem %s1, %s217
        %v219 = vld [vmem:[%s218] sm:$0x1]
        %vm220 = vcmask 253952
        %221 = vst.msk [vmem:[#allocation2] sm:$0x1] %vm220, %v219
        %s222 = sadd.s32 %s216, 1
        %s223 = sld [smem:[#allocation4 + %s222]]
        %s224 = scalar_lea.vmem %s1, %s223
        %v225 = vld [vmem:[%s224] sm:$0x1]
        %226 = vst.msk [vmem:[#allocation2 + $0x1] sm:$0x1] %vm220, %v225
        %s227 = sadd.s32 %s216, 2
        %s228 = sld [smem:[#allocation4 + %s227]]
        %s229 = scalar_lea.vmem %s1, %s228
        %v230 = vld [vmem:[%s229] sm:$0x1]
        %231 = vst.msk [vmem:[#allocation2 + $0x2] sm:$0x1] %vm220, %v230
        %s232 = sadd.s32 %s216, 3
        %s233 = sld [smem:[#allocation4 + %s232]]
        %s234 = scalar_lea.vmem %s1, %s233
        %v235 = vld [vmem:[%s234] sm:$0x1]
        %236 = vst.msk [vmem:[#allocation2 + $0x3] sm:$0x1] %vm220, %v235
        %s237 = sadd.s32 %s216, 4
        %s238 = sld [smem:[#allocation4 + %s237]]
        %s239 = scalar_lea.vmem %s1, %s238
        %v240 = vld [vmem:[%s239] sm:$0x1]
        %241 = vst.msk [vmem:[#allocation2 + $0x4] sm:$0x1] %vm220, %v240
        %s242 = sadd.s32 %s216, 5
        %s243 = sld [smem:[#allocation4 + %s242]]
        %s244 = scalar_lea.vmem %s1, %s243
        %v245 = vld [vmem:[%s244] sm:$0x1]
        %246 = vst.msk [vmem:[#allocation2 + $0x5] sm:$0x1] %vm220, %v245
        %s247 = sadd.s32 %s216, 6
        %s248 = sld [smem:[#allocation4 + %s247]]
        %s249 = scalar_lea.vmem %s1, %s248
        %v250 = vld [vmem:[%s249] sm:$0x1]
        %251 = vst.msk [vmem:[#allocation2 + $0x6] sm:$0x1] %vm220, %v250
        %s252 = sadd.s32 %s216, 7
        %s253 = sld [smem:[#allocation4 + %s252]]
        %s254 = scalar_lea.vmem %s1, %s253
        %v255 = vld [vmem:[%s254] sm:$0x1]
        %256 = vst.msk [vmem:[#allocation2 + $0x7] sm:$0x1] %vm220, %v255
        %v257 = vld [vmem:[#allocation2] sm:$0xff]
        %v258 = vld [vmem:[%s213] sm:$0xff]
        %v259 = vadd.f32 %v257, %v258
        %v260 = vld [vmem:[%s3] sm:$0x1]
        %v261 = vld [vmem:[%s4] sm:$0x1]
        %vm262 = vcmask 261120
        %v263 = vsel %vm262, %v259, 0.0
        %264 = vadd.xlane.f32.xlu0 %v263
        %v265 = vpop.xlane.xlu0 %264
        %v266 = vrcp.pop 32.0
        %v267 = vmul.f32 %v265, %v266
        %v268 = vsub.f32 %v259, %v267
        %v269 = vmul.f32 %v268, %v268
        %v270 = vsel %vm262, %v269, 0.0
        %271 = vadd.xlane.f32.xlu0 %v270
        %v272 = vpop.xlane.xlu0 %271
        %v273 = vmul.f32 %v272, %v266
        %v274 = vadd.f32 %v273, 1e-12
        %v275 = vrsqrt.pop %v274
        %v276 = vmul.f32 %v268, %v275
        %v278 = vlaneseq
        %v279 = vshrl.u32 %v278, 7
        %v280 = vsub.s32 0, %v279
        %v281 = vrot.slane %v260, %v280
        %v283 = vmul.f32 %v276, %v281
        %v285 = vlaneseq
        %v286 = vshrl.u32 %v285, 7
        %v287 = vsub.s32 0, %v286
        %v288 = vrot.slane %v261, %v287
        %v290 = vadd.f32 %v283, %v288
        %291 = vst.msk [vmem:[%s209] sm:$0xff] %vm262, %v290
        %s292 = sand.u32 %s136, 1
        %s293 = scalar_lea.sflag [#allocation6], %s292
        %s294 = sand.u32 %s136, 1
        %s295 = smul.addr %s294, 8
        %s296 = scalar_lea.vmem [#allocation5], %s295
        // Predicated region
        $region37: #{tpu_custom_call.1} parent=35 // pred_check
          %p297 = pneg %p146
        $region38: #{tpu_custom_call.1} parent=35 // pred_check_branch
          %299 = sbr.rel (%p297) target = $region40
        $region39: #{tpu_custom_call.1} parent=35 // pred_region
          %s301 = ssub.s32 128, 128
          %302 = vsyncadd %s293, %s301
          %s303 = sadd.s32 %s30, %s29
          %s304 = smul.addr %s303, 128
          %s305 = scalar_lea.hbm %s5, %s304
          %s307 = sshll.u32 %s296, 4
          %s308 = int_to_ptr.vmem [resolvable:$true] %s307
          %310 = dma.vmem_to_hbm [thread:$0]  %s308, 128, %s305, %s293
        $region40: #{tpu_custom_call.1} parent=35 // pred_fallthru
          _
      $region36: #{tpu_custom_call.1} parent=5 // pred_fallthru
        _
      %p311 = scmp.le.s32.totalorder 2, %s20
      // Predicated region
      $region41: #{tpu_custom_call.1} parent=5 // pred_check
        %p312 = pneg %p311
      $region42: #{tpu_custom_call.1} parent=5 // pred_check_branch
        %314 = sbr.rel (%p312) target = $region44
      $region43: #{tpu_custom_call.1} parent=5 // pred_region
        %s315 = ssub.s32 %s20, 2
        // Predicated region
        $region45: #{tpu_custom_call.1} parent=43 // pred_check
          %p316 = pneg %p152
        $region46: #{tpu_custom_call.1} parent=43 // pred_check_branch
          %318 = sbr.rel (%p316) target = $region48
        $region47: #{tpu_custom_call.1} parent=43 // pred_region
          %s319 = sand.u32 %s137, 1
          %s320 = scalar_lea.sflag [#allocation6], %s319
          %s321 = sand.u32 %s137, 1
          %s322 = smul.addr %s321, 8
          %s323 = scalar_lea.vmem [#allocation5], %s322
          %324 = dma.done %s320, 128
        $region48: #{tpu_custom_call.1} parent=43 // pred_fallthru
          _
      $region44: #{tpu_custom_call.1} parent=5 // pred_fallthru
        _
    $region6: #{tpu_custom_call.1} parent=1 // loop_footer
      %s24 = sadd.s32 1, %s20
    $region7: #{tpu_custom_call.1} parent=1 // loop_footer_branch
      %19 = sbr.rel target = $region3
    $region8: #{tpu_custom_call.1} parent=1 // loop_exit
      _
    %325 = vsyncpa [#allocation6], 1
    %s326 = scalar_lea.sflag [#allocation6], 1
    %327 = vsyncpa %s326, 1

</llo_original>
